<compile_context>
chip_gen: v6e
topology: v6e:2x2x1
jax: 0.10.0
libtpu: 0.0.40
codegen_flags: <defaults>
</compile_context>

<pallas_src>
import jax
import jax.numpy as jnp
from jax.experimental import pallas as pl
from jax.experimental.pallas import tpu as pltpu


# ---------------------------------------------------------------------------
# Scalar path: SMEM in / SMEM out, scalar-ALU add, aliased output buffer.
# ---------------------------------------------------------------------------
def _add_one_scalar_kernel(x_ref, o_ref):
    o_ref[0] = x_ref[0] + 1.0


def _add_one_scalar(x1):
    return pl.pallas_call(
        _add_one_scalar_kernel,
        out_shape=jax.ShapeDtypeStruct((1,), jnp.float32),
        in_specs=[pl.BlockSpec(memory_space=pltpu.MemorySpace.SMEM)],
        out_specs=pl.BlockSpec(memory_space=pltpu.MemorySpace.SMEM),
        input_output_aliases={0: 0},
    )(x1)


# ---------------------------------------------------------------------------
# Array path: lane-dense VMEM tiles, HBM-bandwidth-bound elementwise add.
# ---------------------------------------------------------------------------
_LANES = 512      # last-dim tile width: multiple of 128 -> unmasked stores
_MAX_ROWS = 512   # rows per tile: 512x512 f32 = 1 MiB per buffer


def _add_one_tile_kernel(x_ref, o_ref):
    o_ref[...] = x_ref[...] + 1.0


def _round_up(a, b):
    return ((a + b - 1) // b) * b


def _add_one_array(x):
    orig_shape = x.shape
    n = x.size
    flat = x.reshape(-1)
    # Lay the data out as a lane-dense 2D slab (rows x 512).
    rows = _round_up(pl.cdiv(n, _LANES), 8)   # sublane multiple of 8 (f32)
    tm = min(rows, _MAX_ROWS)
    rows = _round_up(rows, tm)                # grid divides evenly
    padded = rows * _LANES
    if padded != n:
        flat = jnp.pad(flat, (0, padded - n))
    x2d = flat.reshape(rows, _LANES)

    out2d = pl.pallas_call(
        _add_one_tile_kernel,
        out_shape=jax.ShapeDtypeStruct((rows, _LANES), x.dtype),
        grid=(rows // tm,),
        in_specs=[pl.BlockSpec((tm, _LANES), lambda i: (i, 0))],
        out_specs=pl.BlockSpec((tm, _LANES), lambda i: (i, 0)),
        compiler_params=pltpu.CompilerParams(
            dimension_semantics=("parallel",)),  # shards across v7x's 2 TCs
    )(x2d)

    return out2d.reshape(-1)[:n].reshape(orig_shape)


@jax.jit
def demo_forward(x):
    """Equivalent of Demo.forward: returns x + 1."""
    x = jnp.asarray(x, jnp.float32)
    if x.ndim == 0:
        # Scalar case of the reference module: SMEM scalar-ALU kernel.
        return _add_one_scalar(x.reshape(1)).reshape(())
    return _add_one_array(x)


if __name__ == "__main__":
    key = jax.random.PRNGKey(0)

    # Module-spec input: x = torch.tensor(1.0)  ->  0-d scalar.
    x = jnp.float32(1.0)
    out = demo_forward(x)
    jax.block_until_ready(out)
    assert out.shape == ()
    assert jnp.allclose(out, jnp.float32(2.0)), (out,)

    # Extra sanity check of the tiled (array) path at a small shape.
    xa = jax.random.normal(key, (2, 4, 16, 16), dtype=jnp.float32)
    outa = demo_forward(xa)
    jax.block_until_ready(outa)
    assert outa.shape == xa.shape
    assert jnp.allclose(outa, xa + 1.0), "array path mismatch"

    print("KERNEL_OK")
</pallas_src>

<mosaic_0001>
module attributes {stable_mosaic.version = 11 : i64} {
  func.func @_add_one_scalar_kernel(%arg0: memref<1xf32, #tpu.memory_space<smem>>, %arg1: memref<1xf32, #tpu.memory_space<smem>>) attributes {dimension_semantics = [], scalar_prefetch = 0 : i64, scratch_operands = 0 : i64, tpu.core_type = #tpu.core_type<tc>} {
    %c0 = arith.constant 0 : index
    %0 = memref.load %arg0[%c0] : memref<1xf32, #tpu.memory_space<smem>>
    %cst = arith.constant 1.000000e+00 : f32
    %1 = arith.addf %0, %cst : f32
    %c0_0 = arith.constant 0 : index
    %2 = memref.load %arg1[%c0_0] : memref<1xf32, #tpu.memory_space<smem>>
    memref.store %1, %arg1[%c0_0] : memref<1xf32, #tpu.memory_space<smem>>
    return
  }
}

</mosaic_0001>

<llo_original>
// kernel: demo_forward.1
$region0: #{demo_forward.1}
  #allocation0 [shape = 'u32[]', space=smem, size = 0x4, offset = 0x4, fixed_abs, tag = 'smem constant byte address 0x4 - core index']
  #allocation1 [shape = 'u32[144,128]{1,0:T(1,128)}', space=vmem, size = 0x12000, scoped, tag = 'internal scratch']
  #allocation2 [shape = 'f32[1]{0:T(128)S(6)}', space=smem, size = 0x200, scoped, tag = 'scoped memory for demo_forward.1']
  %s0 = inlined_call_operand.<no memory space> [shape: f32[1], index: 0, kind: input, shape index: {}, may-alias: {0,1}]
  %s1 = inlined_call_operand.hbm [shape: f32[1], index: 1, kind: output, shape index: {}, may-alias: {0,1}]
  %s2 = sld [smem:[#allocation0]]
  $region14: #{demo_forward.1} parent=0
    _
  %s4 = ssub.s32 1, %s2
  %s5 = scalar_select 0, %s4, %s2
  %6 = sst [smem:[#allocation2]] %s0
  $region1: #{demo_forward.1} parent=0
    #allocation3 [shape = 'u8[512]{0}', space=smem, size = 0x200, scoped, tag = 'output window, operand 0, single buffered']
    #allocation4 [shape = 's32[1]{0}', space=sflag, size = 0x4, scoped, tag = 'scoped memory for demo_forward.1']
    %7 = vsyncpa [#allocation4], 0
    // Predicated region
    $region2: #{demo_forward.1} parent=1 // pred_check
      _
    $region3: #{demo_forward.1} parent=1 // pred_check_branch
      %9 = sbr.rel (0) target = $region5
    $region4: #{demo_forward.1} parent=1 // pred_region
      _
    $region5: #{demo_forward.1} parent=1 // pred_fallthru
      _
    %s10 = sld [smem:[#allocation2]]
    %s11 = sadd.f32 %s10, 1.0
    %s12 = scalar_lea.smem [#allocation3], 0
    %13 = sst [smem:[%s12]] %s11
    // Predicated region
    $region6: #{demo_forward.1} parent=1 // pred_check
      _
    $region7: #{demo_forward.1} parent=1 // pred_check_branch
      %15 = sbr.rel (0) target = $region9
    $region8: #{demo_forward.1} parent=1 // pred_region
      %s17 = ssub.s32 16, 16
      %18 = vsyncadd [#allocation4], %s17
      %21 = dma.smem_to_hbm [#allocation3], 16, %s1, [#allocation4]
    $region9: #{demo_forward.1} parent=1 // pred_fallthru
      _
    // Predicated region
    $region10: #{demo_forward.1} parent=1 // pred_check
      _
    $region11: #{demo_forward.1} parent=1 // pred_check_branch
      %23 = sbr.rel (0) target = $region13
    $region12: #{demo_forward.1} parent=1 // pred_region
      %24 = dma.done [#allocation4], 16
    $region13: #{demo_forward.1} parent=1 // pred_fallthru
      _
    %25 = sfence
    %26 = vsyncpa [#allocation4], 1

</llo_original>
